<compile_context>
chip_gen: v7x
topology: tpu7x:2x2x1
jax: 0.10.0
libtpu: 0.0.40
codegen_flags: <defaults>
</compile_context>

<pallas_src>
import jax
import jax.numpy as jnp
from jax.experimental import pallas as pl
from jax.experimental.pallas import tpu as pltpu

# Small, module-consistent synthetic shapes.
B = 8                               # batch (sublane-dense for f32 vregs)
C, H, W = 4, 16, 16                 # image: NCHW
T, D = 8, 32                        # question tokens / text embedding dim
HIDDEN = 64                         # fusion hidden size
NUM_ANSWERS = 128                   # answer vocabulary size (lane-friendly)

K_IMG = C * H * W                   # 1024
K_TXT = T * D                       # 256
K_ALL = K_IMG + K_TXT               # 1280 (10 * 128 lanes)


def qlarifais_kernel(x_ref, w_fuse_ref, w_cls_ref, bias_ref,
                     logits_ref, probs_ref, conf_ref, idx_ref):
    bias = bias_ref[...]                                   # (2, NUM_ANSWERS) f32

    # ---- synthetic model forward (self.model(sample_list)) ----
    # Single fused matmul == [mean_pool(img), mean_pool(txt)] @ [W_img; W_txt]
    # (mean divisors are folded into w_fuse at init time).
    fused = jnp.dot(x_ref[...], w_fuse_ref[...],
                    preferred_element_type=jnp.float32)    # (B, HIDDEN) f32
    fused = fused + bias[0:1, 0:HIDDEN]                    # b_fuse
    h = jnp.maximum(fused, 0.0)                            # ReLU

    # answer classifier -> output['prediction_scores']
    logits = jnp.dot(h.astype(jnp.bfloat16), w_cls_ref[...],
                     preferred_element_type=jnp.float32)   # (B, A) f32
    logits = logits + bias[1:2, :]                         # b_cls
    logits_ref[...] = logits

    # ---- classify() tail: softmax over dim=1 ----
    m = jnp.max(logits, axis=1, keepdims=True)             # (B, 1)
    e = jnp.exp(logits - m)
    s = jnp.sum(e, axis=1, keepdims=True)
    inv_s = pl.reciprocal(s, approx=True)                  # EUP vrcp slot
    probs = e * inv_s
    probs_ref[...] = probs

    # torch.max(scores, dim=1): max prob == exp(m - m) / s == 1/s exactly,
    # and the first argmax of the probs equals the first argmax of the logits
    # (same tensor the max m was taken from, so exact-equality is safe).
    conf_ref[...] = inv_s
    ids = jax.lax.broadcasted_iota(jnp.int32, logits.shape, 1)
    idx = jnp.min(jnp.where(logits == m, ids, NUM_ANSWERS),
                  axis=1, keepdims=True)
    idx_ref[...] = idx.astype(jnp.int32)


def qlarifais_classify(image_nchw, text_emb, params):
    """Synthetic Qlarifais forward + classify() tail in one Pallas call.

    Returns (prediction_scores, softmax_scores, confidence, label_index).
    """
    # Layout plumbing only: flatten + concat both modalities into one
    # lane-dense (B, 1280) slab and cast to bf16 for the MXU.
    x = jnp.concatenate(
        [image_nchw.reshape(B, K_IMG), text_emb.reshape(B, K_TXT)],
        axis=1).astype(jnp.bfloat16)

    out_shapes = (
        jax.ShapeDtypeStruct((B, NUM_ANSWERS), jnp.float32),  # prediction_scores
        jax.ShapeDtypeStruct((B, NUM_ANSWERS), jnp.float32),  # softmax scores
        jax.ShapeDtypeStruct((B, 1), jnp.float32),            # confidence
        jax.ShapeDtypeStruct((B, 1), jnp.int32),              # label index
    )
    vmem = pl.BlockSpec(memory_space=pltpu.MemorySpace.VMEM)
    return pl.pallas_call(
        qlarifais_kernel,
        out_shape=out_shapes,
        in_specs=[vmem] * 4,
        out_specs=(vmem, vmem, vmem, vmem),
    )(x, params["w_fuse"], params["w_cls"], params["bias"])


def init_params(key):
    k1, k2, k3, k4, k5 = jax.random.split(key, 5)
    scale = 0.05
    w_img = scale * jax.random.normal(k1, (C, HIDDEN), jnp.float32)
    w_txt = scale * jax.random.normal(k2, (D, HIDDEN), jnp.float32)
    b_fuse = 0.01 * jax.random.normal(k5, (HIDDEN,), jnp.float32)
    w_cls = scale * jax.random.normal(k3, (HIDDEN, NUM_ANSWERS), jnp.float32)
    b_cls = 0.01 * jax.random.normal(k4, (NUM_ANSWERS,), jnp.float32)

    # One-time weight preprocessing (not per-call input scaling):
    # expand the fusion weight so flatten(img) @ w_img_big == mean_pool(img) @ w_img
    # (and likewise for text), with the 1/(H*W) and 1/T divisors folded in.
    w_img_big = jnp.repeat(w_img / float(H * W), H * W, axis=0)   # (C*H*W, HIDDEN)
    w_txt_big = jnp.tile(w_txt / float(T), (T, 1))                # (T*D, HIDDEN)
    w_fuse = jnp.concatenate([w_img_big, w_txt_big], axis=0).astype(jnp.bfloat16)

    # Pack both biases into a single (2, NUM_ANSWERS) blob -> one input DMA.
    bias = jnp.zeros((2, NUM_ANSWERS), jnp.float32)
    bias = bias.at[0, :HIDDEN].set(b_fuse).at[1, :].set(b_cls)

    return {
        # kernel inputs
        "w_fuse": w_fuse,                      # (K_ALL, HIDDEN) bf16
        "w_cls": w_cls.astype(jnp.bfloat16),   # (HIDDEN, NUM_ANSWERS) bf16
        "bias": bias,                          # (2, NUM_ANSWERS) f32
        # f32 originals kept only for the pure-JAX reference check
        "w_img": w_img, "w_txt": w_txt, "b_fuse": b_fuse,
        "w_cls_f32": w_cls, "b_cls": b_cls,
    }
    # TODO(synk): the real QlarifaisInterface also builds MMF image/text/answer
    # processors (PIL + tokenizer + answer-vocab I/O); that is host-side glue
    # with no Pallas equivalent and is not modeled here.


if __name__ == "__main__":
    key = jax.random.PRNGKey(0)
    k_img, k_txt, k_par = jax.random.split(key, 3)

    image = jax.random.normal(k_img, (B, C, H, W), jnp.float32)   # NCHW
    text_emb = jax.random.normal(k_txt, (B, T, D), jnp.float32)
    params = init_params(k_par)

    logits, probs, conf, idx = jax.block_until_ready(
        qlarifais_classify(image, text_emb, params))

    # Pure-JAX f32 reference of the synthetic forward.
    img_pooled = image.mean(axis=(2, 3))                           # (B, C)
    txt_pooled = text_emb.mean(axis=1)                             # (B, D)
    fused_ref = jnp.maximum(
        img_pooled @ params["w_img"] + txt_pooled @ params["w_txt"]
        + params["b_fuse"], 0.0)
    ref_logits = fused_ref @ params["w_cls_f32"] + params["b_cls"]

    assert logits.shape == (B, NUM_ANSWERS) and probs.shape == (B, NUM_ANSWERS)
    assert conf.shape == (B, 1) and idx.shape == (B, 1)
    # bf16 matmul inputs -> modest tolerance vs f32 reference
    assert jnp.allclose(logits, ref_logits, rtol=0.05, atol=5e-3)
    # approx=True reciprocal -> rows sum to 1 only to ~1e-3
    assert jnp.allclose(jnp.sum(probs, axis=1), 1.0, atol=5e-3)
    assert jnp.allclose(conf[:, 0], jnp.max(probs, axis=1), atol=1e-6)
    assert jnp.all(idx[:, 0] == jnp.argmax(logits, axis=1))

    print("KERNEL_OK")
</pallas_src>

<mosaic_0001>
module attributes {stable_mosaic.version = 11 : i64} {
  func.func @qlarifais_kernel(%arg0: memref<8x1280xbf16, #tpu.memory_space<vmem>>, %arg1: memref<1280x64xbf16, #tpu.memory_space<vmem>>, %arg2: memref<64x128xbf16, #tpu.memory_space<vmem>>, %arg3: memref<2x128xf32, #tpu.memory_space<vmem>>, %arg4: memref<8x128xf32, #tpu.memory_space<vmem>>, %arg5: memref<8x128xf32, #tpu.memory_space<vmem>>, %arg6: memref<8x1xf32, #tpu.memory_space<vmem>>, %arg7: memref<8x1xi32, #tpu.memory_space<vmem>>) attributes {dimension_semantics = [], scalar_prefetch = 0 : i64, scratch_operands = 0 : i64, tpu.core_type = #tpu.core_type<tc>} {
    %c0 = arith.constant 0 : index
    %c0_0 = arith.constant 0 : index
    %0 = vector.load %arg3[%c0, %c0_0] : memref<2x128xf32, #tpu.memory_space<vmem>>, vector<2x128xf32>
    %c0_1 = arith.constant 0 : index
    %c0_2 = arith.constant 0 : index
    %1 = vector.load %arg0[%c0_1, %c0_2] : memref<8x1280xbf16, #tpu.memory_space<vmem>>, vector<8x1280xbf16>
    %c0_3 = arith.constant 0 : index
    %c0_4 = arith.constant 0 : index
    %2 = vector.load %arg1[%c0_3, %c0_4] : memref<1280x64xbf16, #tpu.memory_space<vmem>>, vector<1280x64xbf16>
    %cst = arith.constant dense<0.000000e+00> : vector<8x64xf32>
    %3 = tpu.matmul %1, %2, %cst {dimension_numbers = #tpu.dot_dimension_numbers<[1], [0], [0], [1], [0, 0, 1, 1], [], []>} : vector<8x1280xbf16>, vector<1280x64xbf16>, vector<8x64xf32> -> vector<8x64xf32>
    %4 = vector.extract_strided_slice %0 {offsets = [0, 0], sizes = [1, 64], strides = [1, 1]} : vector<2x128xf32> to vector<1x64xf32>
    %5 = vector.broadcast %4 : vector<1x64xf32> to vector<8x64xf32>
    %6 = arith.addf %3, %5 : vector<8x64xf32>
    %cst_5 = arith.constant 0.000000e+00 : f32
    %7 = vector.broadcast %cst_5 : f32 to vector<8x64xf32>
    %8 = arith.maximumf %6, %7 : vector<8x64xf32>
    %9 = arith.truncf %8 : vector<8x64xf32> to vector<8x64xbf16>
    %c0_6 = arith.constant 0 : index
    %c0_7 = arith.constant 0 : index
    %10 = vector.load %arg2[%c0_6, %c0_7] : memref<64x128xbf16, #tpu.memory_space<vmem>>, vector<64x128xbf16>
    %cst_8 = arith.constant dense<0.000000e+00> : vector<8x128xf32>
    %11 = tpu.matmul %9, %10, %cst_8 {dimension_numbers = #tpu.dot_dimension_numbers<[1], [0], [0], [1], [0, 0, 1, 1], [], []>} : vector<8x64xbf16>, vector<64x128xbf16>, vector<8x128xf32> -> vector<8x128xf32>
    %12 = vector.extract_strided_slice %0 {offsets = [1, 0], sizes = [1, 128], strides = [1, 1]} : vector<2x128xf32> to vector<1x128xf32>
    %13 = vector.broadcast %12 : vector<1x128xf32> to vector<8x128xf32>
    %14 = arith.addf %11, %13 : vector<8x128xf32>
    %c0_9 = arith.constant 0 : index
    %c0_10 = arith.constant 0 : index
    %15 = vector.load %arg4[%c0_9, %c0_10] : memref<8x128xf32, #tpu.memory_space<vmem>>, vector<8x128xf32>
    tpu.vector_store %arg4[%c0_9, %c0_10], %14 {strides = array<i32>} : memref<8x128xf32, #tpu.memory_space<vmem>>, vector<8x128xf32>,
    %cst_11 = arith.constant dense<0xFF800000> : vector<8xf32>
    %16 = vector.multi_reduction <maximumf>, %14, %cst_11 [1] : vector<8x128xf32> to vector<8xf32>
    %17 = vector.shape_cast %16 : vector<8xf32> to vector<8x1xf32>
    %18 = vector.broadcast %17 : vector<8x1xf32> to vector<8x128xf32>
    %19 = arith.subf %14, %18 : vector<8x128xf32>
    %20 = math.exp %19 : vector<8x128xf32>
    %cst_12 = arith.constant dense<0.000000e+00> : vector<8xf32>
    %21 = vector.multi_reduction <add>, %20, %cst_12 [1] : vector<8x128xf32> to vector<8xf32>
    %22 = vector.shape_cast %21 : vector<8xf32> to vector<8x1xf32>
    %23 = tpu.reciprocal %22 {approx = true} : vector<8x1xf32> -> vector<8x1xf32>
    %24 = vector.broadcast %23 : vector<8x1xf32> to vector<8x128xf32>
    %25 = arith.mulf %20, %24 : vector<8x128xf32>
    %c0_13 = arith.constant 0 : index
    %c0_14 = arith.constant 0 : index
    %26 = vector.load %arg5[%c0_13, %c0_14] : memref<8x128xf32, #tpu.memory_space<vmem>>, vector<8x128xf32>
    tpu.vector_store %arg5[%c0_13, %c0_14], %25 {strides = array<i32>} : memref<8x128xf32, #tpu.memory_space<vmem>>, vector<8x128xf32>,
    %c0_15 = arith.constant 0 : index
    %c0_16 = arith.constant 0 : index
    %27 = vector.load %arg6[%c0_15, %c0_16] : memref<8x1xf32, #tpu.memory_space<vmem>>, vector<8x1xf32>
    tpu.vector_store %arg6[%c0_15, %c0_16], %23 {strides = array<i32>} : memref<8x1xf32, #tpu.memory_space<vmem>>, vector<8x1xf32>,
    %28 = tpu.iota {dimensions = array<i32: 1>} : vector<8x128xi32>
    %29 = vector.broadcast %17 : vector<8x1xf32> to vector<8x128xf32>
    %30 = arith.cmpf oeq, %14, %29 : vector<8x128xf32>
    %c128_i32 = arith.constant 128 : i32
    %31 = vector.broadcast %c128_i32 : i32 to vector<8x128xi32>
    %32 = arith.select %30, %28, %31 : vector<8x128xi1>, vector<8x128xi32>
    %cst_17 = arith.constant dense<2147483647> : vector<8xi32>
    %33 = vector.multi_reduction <minsi>, %32, %cst_17 [1] : vector<8x128xi32> to vector<8xi32>
    %34 = vector.shape_cast %33 : vector<8xi32> to vector<8x1xi32>
    %c0_18 = arith.constant 0 : index
    %c0_19 = arith.constant 0 : index
    %35 = vector.load %arg7[%c0_18, %c0_19] : memref<8x1xi32, #tpu.memory_space<vmem>>, vector<8x1xi32>
    tpu.vector_store %arg7[%c0_18, %c0_19], %34 {strides = array<i32>} : memref<8x1xi32, #tpu.memory_space<vmem>>, vector<8x1xi32>,
    return
  }
}

</mosaic_0001>

<llo_original>
// kernel: tpu_custom_call.1
$region0: #{tpu_custom_call.1}
  #allocation0 [shape = 'u32[]', space=smem, size = 0x4, offset = 0x4, fixed_abs, tag = 'smem constant byte address 0x4 - core index']
  #allocation1 [shape = 'u32[144,128]{1,0:T(1,128)}', space=vmem, size = 0x12000, scoped, tag = 'internal scratch']
  %s0 = inlined_call_operand.vmem [shape: bf16[8,1280], index: 0, kind: input, shape index: {}]
  %s1 = inlined_call_operand.vmem [shape: bf16[1280,64], index: 1, kind: input, shape index: {}]
  %s2 = inlined_call_operand.vmem [shape: bf16[64,128], index: 2, kind: input, shape index: {}]
  %s3 = inlined_call_operand.vmem [shape: f32[2,128], index: 3, kind: input, shape index: {}]
  %s4 = inlined_call_operand.hbm [shape: f32[8,128], index: 4, kind: output, shape index: {0}]
  %s5 = inlined_call_operand.hbm [shape: f32[8,128], index: 5, kind: output, shape index: {1}]
  %s6 = inlined_call_operand.vmem [shape: f32[8,1], index: 6, kind: output, shape index: {2}]
  %s7 = inlined_call_operand.vmem [shape: s32[8,1], index: 7, kind: output, shape index: {3}]
  %8 = xla_tuple %s4, %s5, %s6, %s7
  %s9 = sld [smem:[#allocation0]]
  $region50: #{tpu_custom_call.1} parent=0
    _
  %s11 = ssub.s32 1, %s9
  %s12 = scalar_select 0, %s11, %s9
  $region1: #{tpu_custom_call.1} parent=0
    #allocation2 [shape = 'u8[4096]{0}', space=vmem, size = 0x1000, scoped, tag = 'output window, operand 0, single buffered']
    #allocation3 [shape = 's32[1]{0}', space=sflag, size = 0x4, scoped, tag = 'scoped memory for tpu_custom_call.1']
    #allocation4 [shape = 'u8[4096]{0}', space=vmem, size = 0x1000, scoped, tag = 'output window, operand 1, single buffered']
    #allocation5 [shape = 's32[1]{0}', space=sflag, size = 0x4, scoped, tag = 'scoped memory for tpu_custom_call.1']
    %13 = vsyncpa [#allocation3], 0
    %14 = vsyncpa [#allocation5], 0
    // Predicated region
    $region2: #{tpu_custom_call.1} parent=1 // pred_check
      _
    $region3: #{tpu_custom_call.1} parent=1 // pred_check_branch
      %16 = sbr.rel (0) target = $region5
    $region4: #{tpu_custom_call.1} parent=1 // pred_region
      _
    $region5: #{tpu_custom_call.1} parent=1 // pred_fallthru
      _
    // Predicated region
    $region6: #{tpu_custom_call.1} parent=1 // pred_check
      _
    $region7: #{tpu_custom_call.1} parent=1 // pred_check_branch
      %18 = sbr.rel (0) target = $region9
    $region8: #{tpu_custom_call.1} parent=1 // pred_region
      _
    $region9: #{tpu_custom_call.1} parent=1 // pred_fallthru
      _
    // Predicated region
    $region10: #{tpu_custom_call.1} parent=1 // pred_check
      _
    $region11: #{tpu_custom_call.1} parent=1 // pred_check_branch
      %20 = sbr.rel (0) target = $region13
    $region12: #{tpu_custom_call.1} parent=1 // pred_region
      _
    $region13: #{tpu_custom_call.1} parent=1 // pred_fallthru
      _
    // Predicated region
    $region14: #{tpu_custom_call.1} parent=1 // pred_check
      _
    $region15: #{tpu_custom_call.1} parent=1 // pred_check_branch
      %22 = sbr.rel (0) target = $region17
    $region16: #{tpu_custom_call.1} parent=1 // pred_region
      _
    $region17: #{tpu_custom_call.1} parent=1 // pred_fallthru
      _
    %v24 = vld [vmem:[%s3] sm:$0x3]
    %v25 = vld [vmem:[%s0] sm:$0xff]
    %v26 = vld [vmem:[%s0 + $0x8] sm:$0xff]
    %v27 = vld [vmem:[%s0 + $0x10] sm:$0xff]
    %v28 = vld [vmem:[%s0 + $0x18] sm:$0xff]
    %v29 = vld [vmem:[%s0 + $0x20] sm:$0xff]
    %v30 = vld [vmem:[%s1] sm:$0xf]
    %v31 = vld [vmem:[%s1 + $0x4] sm:$0xf]
    %v32 = vld [vmem:[%s1 + $0x8] sm:$0xf]
    %v33 = vld [vmem:[%s1 + $0xc] sm:$0xf]
    %v34 = vld [vmem:[%s1 + $0x10] sm:$0xf]
    %v35 = vld [vmem:[%s1 + $0x14] sm:$0xf]
    %v36 = vld [vmem:[%s1 + $0x18] sm:$0xf]
    %v37 = vld [vmem:[%s1 + $0x1c] sm:$0xf]
    %v38 = vld [vmem:[%s1 + $0x20] sm:$0xf]
    %v39 = vld [vmem:[%s1 + $0x24] sm:$0xf]
    %v40 = vld [vmem:[%s1 + $0x28] sm:$0xf]
    %v41 = vld [vmem:[%s1 + $0x2c] sm:$0xf]
    %v42 = vld [vmem:[%s1 + $0x30] sm:$0xf]
    %v43 = vld [vmem:[%s1 + $0x34] sm:$0xf]
    %v44 = vld [vmem:[%s1 + $0x38] sm:$0xf]
    %v45 = vld [vmem:[%s1 + $0x3c] sm:$0xf]
    %v46 = vld [vmem:[%s1 + $0x40] sm:$0xf]
    %v47 = vld [vmem:[%s1 + $0x44] sm:$0xf]
    %v48 = vld [vmem:[%s1 + $0x48] sm:$0xf]
    %v49 = vld [vmem:[%s1 + $0x4c] sm:$0xf]
    %v50 = vld [vmem:[%s1 + $0x50] sm:$0xf]
    %v51 = vld [vmem:[%s1 + $0x54] sm:$0xf]
    %v52 = vld [vmem:[%s1 + $0x58] sm:$0xf]
    %v53 = vld [vmem:[%s1 + $0x5c] sm:$0xf]
    %v54 = vld [vmem:[%s1 + $0x60] sm:$0xf]
    %v55 = vld [vmem:[%s1 + $0x64] sm:$0xf]
    %v56 = vld [vmem:[%s1 + $0x68] sm:$0xf]
    %v57 = vld [vmem:[%s1 + $0x6c] sm:$0xf]
    %v58 = vld [vmem:[%s1 + $0x70] sm:$0xf]
    %v59 = vld [vmem:[%s1 + $0x74] sm:$0xf]
    %v60 = vld [vmem:[%s1 + $0x78] sm:$0xf]
    %v61 = vld [vmem:[%s1 + $0x7c] sm:$0xf]
    %v62 = vld [vmem:[%s1 + $0x80] sm:$0xf]
    %v63 = vld [vmem:[%s1 + $0x84] sm:$0xf]
    %v64 = vld [vmem:[%s1 + $0x88] sm:$0xf]
    %v65 = vld [vmem:[%s1 + $0x8c] sm:$0xf]
    %v66 = vld [vmem:[%s1 + $0x90] sm:$0xf]
    %v67 = vld [vmem:[%s1 + $0x94] sm:$0xf]
    %v68 = vld [vmem:[%s1 + $0x98] sm:$0xf]
    %v69 = vld [vmem:[%s1 + $0x9c] sm:$0xf]
    %v70 = vld [vmem:[%s1 + $0xa0] sm:$0xf]
    %v71 = vld [vmem:[%s1 + $0xa4] sm:$0xf]
    %v72 = vld [vmem:[%s1 + $0xa8] sm:$0xf]
    %v73 = vld [vmem:[%s1 + $0xac] sm:$0xf]
    %v74 = vld [vmem:[%s1 + $0xb0] sm:$0xf]
    %v75 = vld [vmem:[%s1 + $0xb4] sm:$0xf]
    %v76 = vld [vmem:[%s1 + $0xb8] sm:$0xf]
    %v77 = vld [vmem:[%s1 + $0xbc] sm:$0xf]
    %v78 = vld [vmem:[%s1 + $0xc0] sm:$0xf]
    %v79 = vld [vmem:[%s1 + $0xc4] sm:$0xf]
    %v80 = vld [vmem:[%s1 + $0xc8] sm:$0xf]
    %v81 = vld [vmem:[%s1 + $0xcc] sm:$0xf]
    %v82 = vld [vmem:[%s1 + $0xd0] sm:$0xf]
    %v83 = vld [vmem:[%s1 + $0xd4] sm:$0xf]
    %v84 = vld [vmem:[%s1 + $0xd8] sm:$0xf]
    %v85 = vld [vmem:[%s1 + $0xdc] sm:$0xf]
    %v86 = vld [vmem:[%s1 + $0xe0] sm:$0xf]
    %v87 = vld [vmem:[%s1 + $0xe4] sm:$0xf]
    %v88 = vld [vmem:[%s1 + $0xe8] sm:$0xf]
    %v89 = vld [vmem:[%s1 + $0xec] sm:$0xf]
    %v90 = vld [vmem:[%s1 + $0xf0] sm:$0xf]
    %v91 = vld [vmem:[%s1 + $0xf4] sm:$0xf]
    %v92 = vld [vmem:[%s1 + $0xf8] sm:$0xf]
    %v93 = vld [vmem:[%s1 + $0xfc] sm:$0xf]
    %v94 = vld [vmem:[%s1 + $0x100] sm:$0xf]
    %v95 = vld [vmem:[%s1 + $0x104] sm:$0xf]
    %v96 = vld [vmem:[%s1 + $0x108] sm:$0xf]
    %v97 = vld [vmem:[%s1 + $0x10c] sm:$0xf]
    %v98 = vld [vmem:[%s1 + $0x110] sm:$0xf]
    %v99 = vld [vmem:[%s1 + $0x114] sm:$0xf]
    %v100 = vld [vmem:[%s1 + $0x118] sm:$0xf]
    %v101 = vld [vmem:[%s1 + $0x11c] sm:$0xf]
    %v102 = vld [vmem:[%s1 + $0x120] sm:$0xf]
    %v103 = vld [vmem:[%s1 + $0x124] sm:$0xf]
    %v104 = vld [vmem:[%s1 + $0x128] sm:$0xf]
    %v105 = vld [vmem:[%s1 + $0x12c] sm:$0xf]
    %v106 = vld [vmem:[%s1 + $0x130] sm:$0xf]
    %v107 = vld [vmem:[%s1 + $0x134] sm:$0xf]
    %v108 = vld [vmem:[%s1 + $0x138] sm:$0xf]
    %v109 = vld [vmem:[%s1 + $0x13c] sm:$0xf]
    %v110 = vld [vmem:[%s1 + $0x140] sm:$0xf]
    %v111 = vld [vmem:[%s1 + $0x144] sm:$0xf]
    %v112 = vld [vmem:[%s1 + $0x148] sm:$0xf]
    %v113 = vld [vmem:[%s1 + $0x14c] sm:$0xf]
    %v114 = vld [vmem:[%s1 + $0x150] sm:$0xf]
    %v115 = vld [vmem:[%s1 + $0x154] sm:$0xf]
    %v116 = vld [vmem:[%s1 + $0x158] sm:$0xf]
    %v117 = vld [vmem:[%s1 + $0x15c] sm:$0xf]
    %v118 = vld [vmem:[%s1 + $0x160] sm:$0xf]
    %v119 = vld [vmem:[%s1 + $0x164] sm:$0xf]
    %v120 = vld [vmem:[%s1 + $0x168] sm:$0xf]
    %v121 = vld [vmem:[%s1 + $0x16c] sm:$0xf]
    %v122 = vld [vmem:[%s1 + $0x170] sm:$0xf]
    %v123 = vld [vmem:[%s1 + $0x174] sm:$0xf]
    %v124 = vld [vmem:[%s1 + $0x178] sm:$0xf]
    %v125 = vld [vmem:[%s1 + $0x17c] sm:$0xf]
    %v126 = vld [vmem:[%s1 + $0x180] sm:$0xf]
    %v127 = vld [vmem:[%s1 + $0x184] sm:$0xf]
    %v128 = vld [vmem:[%s1 + $0x188] sm:$0xf]
    %v129 = vld [vmem:[%s1 + $0x18c] sm:$0xf]
    %v130 = vld [vmem:[%s1 + $0x190] sm:$0xf]
    %v131 = vld [vmem:[%s1 + $0x194] sm:$0xf]
    %v132 = vld [vmem:[%s1 + $0x198] sm:$0xf]
    %v133 = vld [vmem:[%s1 + $0x19c] sm:$0xf]
    %v134 = vld [vmem:[%s1 + $0x1a0] sm:$0xf]
    %v135 = vld [vmem:[%s1 + $0x1a4] sm:$0xf]
    %v136 = vld [vmem:[%s1 + $0x1a8] sm:$0xf]
    %v137 = vld [vmem:[%s1 + $0x1ac] sm:$0xf]
    %v138 = vld [vmem:[%s1 + $0x1b0] sm:$0xf]
    %v139 = vld [vmem:[%s1 + $0x1b4] sm:$0xf]
    %v140 = vld [vmem:[%s1 + $0x1b8] sm:$0xf]
    %v141 = vld [vmem:[%s1 + $0x1bc] sm:$0xf]
    %v142 = vld [vmem:[%s1 + $0x1c0] sm:$0xf]
    %v143 = vld [vmem:[%s1 + $0x1c4] sm:$0xf]
    %v144 = vld [vmem:[%s1 + $0x1c8] sm:$0xf]
    %v145 = vld [vmem:[%s1 + $0x1cc] sm:$0xf]
    %v146 = vld [vmem:[%s1 + $0x1d0] sm:$0xf]
    %v147 = vld [vmem:[%s1 + $0x1d4] sm:$0xf]
    %v148 = vld [vmem:[%s1 + $0x1d8] sm:$0xf]
    %v149 = vld [vmem:[%s1 + $0x1dc] sm:$0xf]
    %v150 = vld [vmem:[%s1 + $0x1e0] sm:$0xf]
    %v151 = vld [vmem:[%s1 + $0x1e4] sm:$0xf]
    %v152 = vld [vmem:[%s1 + $0x1e8] sm:$0xf]
    %v153 = vld [vmem:[%s1 + $0x1ec] sm:$0xf]
    %v154 = vld [vmem:[%s1 + $0x1f0] sm:$0xf]
    %v155 = vld [vmem:[%s1 + $0x1f4] sm:$0xf]
    %v156 = vld [vmem:[%s1 + $0x1f8] sm:$0xf]
    %v157 = vld [vmem:[%s1 + $0x1fc] sm:$0xf]
    %v158 = vld [vmem:[%s1 + $0x200] sm:$0xf]
    %v159 = vld [vmem:[%s1 + $0x204] sm:$0xf]
    %v160 = vld [vmem:[%s1 + $0x208] sm:$0xf]
    %v161 = vld [vmem:[%s1 + $0x20c] sm:$0xf]
    %v162 = vld [vmem:[%s1 + $0x210] sm:$0xf]
    %v163 = vld [vmem:[%s1 + $0x214] sm:$0xf]
    %v164 = vld [vmem:[%s1 + $0x218] sm:$0xf]
    %v165 = vld [vmem:[%s1 + $0x21c] sm:$0xf]
    %v166 = vld [vmem:[%s1 + $0x220] sm:$0xf]
    %v167 = vld [vmem:[%s1 + $0x224] sm:$0xf]
    %v168 = vld [vmem:[%s1 + $0x228] sm:$0xf]
    %v169 = vld [vmem:[%s1 + $0x22c] sm:$0xf]
    %v170 = vld [vmem:[%s1 + $0x230] sm:$0xf]
    %v171 = vld [vmem:[%s1 + $0x234] sm:$0xf]
    %v172 = vld [vmem:[%s1 + $0x238] sm:$0xf]
    %v173 = vld [vmem:[%s1 + $0x23c] sm:$0xf]
    %v174 = vld [vmem:[%s1 + $0x240] sm:$0xf]
    %v175 = vld [vmem:[%s1 + $0x244] sm:$0xf]
    %v176 = vld [vmem:[%s1 + $0x248] sm:$0xf]
    %v177 = vld [vmem:[%s1 + $0x24c] sm:$0xf]
    %v178 = vld [vmem:[%s1 + $0x250] sm:$0xf]
    %v179 = vld [vmem:[%s1 + $0x254] sm:$0xf]
    %v180 = vld [vmem:[%s1 + $0x258] sm:$0xf]
    %v181 = vld [vmem:[%s1 + $0x25c] sm:$0xf]
    %v182 = vld [vmem:[%s1 + $0x260] sm:$0xf]
    %v183 = vld [vmem:[%s1 + $0x264] sm:$0xf]
    %v184 = vld [vmem:[%s1 + $0x268] sm:$0xf]
    %v185 = vld [vmem:[%s1 + $0x26c] sm:$0xf]
    %v186 = vld [vmem:[%s1 + $0x270] sm:$0xf]
    %v187 = vld [vmem:[%s1 + $0x274] sm:$0xf]
    %v188 = vld [vmem:[%s1 + $0x278] sm:$0xf]
    %v189 = vld [vmem:[%s1 + $0x27c] sm:$0xf]
    %v190 = vlaneseq
    %v191 = vshrl.u32 %v190, 7
    %v192 = vsub.s32 0, %v191
    %v193 = vrot.slane %v24, %v192
    %v199 = vunpack.c.l.b16 %v25
    %v200 = vunpack.c.h.b16 %v25
    %v201 = vunpack.c.l.b16 %v26
    %v202 = vunpack.c.h.b16 %v26
    %v203 = vunpack.c.l.b16 %v27
    %v204 = vunpack.c.h.b16 %v27
    %v205 = vunpack.c.l.b16 %v28
    %v206 = vunpack.c.h.b16 %v28
    %v207 = vunpack.c.l.b16 %v29
    %v208 = vunpack.c.h.b16 %v29
    %v209 = vpack.c.b16 %v199, %v199
    %v210 = vpack.c.b16 %v200, %v200
    %v211 = vpack.c.b16 %v201, %v201
    %v212 = vpack.c.b16 %v202, %v202
    %v213 = vpack.c.b16 %v203, %v203
    %v214 = vpack.c.b16 %v204, %v204
    %v215 = vpack.c.b16 %v205, %v205
    %v216 = vpack.c.b16 %v206, %v206
    %v217 = vpack.c.b16 %v207, %v207
    %v218 = vpack.c.b16 %v208, %v208
    %v389 = vunpack.c.l.b16 %v30
    %v390 = vunpack.c.l.b16 %v31
    %v391 = vunpack.c.l.b16 %v32
    %v392 = vunpack.c.l.b16 %v33
    %v393 = vunpack.c.l.b16 %v34
    %v394 = vunpack.c.l.b16 %v35
    %v395 = vunpack.c.l.b16 %v36
    %v396 = vunpack.c.l.b16 %v37
    %v397 = vunpack.c.l.b16 %v38
    %v398 = vunpack.c.l.b16 %v39
    %v399 = vunpack.c.l.b16 %v40
    %v400 = vunpack.c.l.b16 %v41
    %v401 = vunpack.c.l.b16 %v42
    %v402 = vunpack.c.l.b16 %v43
    %v403 = vunpack.c.l.b16 %v44
    %v404 = vunpack.c.l.b16 %v45
    %v405 = vunpack.c.l.b16 %v46
    %v406 = vunpack.c.l.b16 %v47
    %v407 = vunpack.c.l.b16 %v48
    %v408 = vunpack.c.l.b16 %v49
    %v409 = vunpack.c.l.b16 %v50
    %v410 = vunpack.c.l.b16 %v51
    %v411 = vunpack.c.l.b16 %v52
    %v412 = vunpack.c.l.b16 %v53
    %v413 = vunpack.c.l.b16 %v54
    %v414 = vunpack.c.l.b16 %v55
    %v415 = vunpack.c.l.b16 %v56
    %v416 = vunpack.c.l.b16 %v57
    %v417 = vunpack.c.l.b16 %v58
    %v418 = vunpack.c.l.b16 %v59
    %v419 = vunpack.c.l.b16 %v60
    %v420 = vunpack.c.l.b16 %v61
    %v421 = vunpack.c.l.b16 %v62
    %v422 = vunpack.c.l.b16 %v63
    %v423 = vunpack.c.l.b16 %v64
    %v424 = vunpack.c.l.b16 %v65
    %v425 = vunpack.c.l.b16 %v66
    %v426 = vunpack.c.l.b16 %v67
    %v427 = vunpack.c.l.b16 %v68
    %v428 = vunpack.c.l.b16 %v69
    %v429 = vunpack.c.l.b16 %v70
    %v430 = vunpack.c.l.b16 %v71
    %v431 = vunpack.c.l.b16 %v72
    %v432 = vunpack.c.l.b16 %v73
    %v433 = vunpack.c.l.b16 %v74
    %v434 = vunpack.c.l.b16 %v75
    %v435 = vunpack.c.l.b16 %v76
    %v436 = vunpack.c.l.b16 %v77
    %v437 = vunpack.c.l.b16 %v78
    %v438 = vunpack.c.l.b16 %v79
    %v439 = vunpack.c.l.b16 %v80
    %v440 = vunpack.c.l.b16 %v81
    %v441 = vunpack.c.l.b16 %v82
    %v442 = vunpack.c.l.b16 %v83
    %v443 = vunpack.c.l.b16 %v84
    %v444 = vunpack.c.l.b16 %v85
    %v445 = vunpack.c.l.b16 %v86
    %v446 = vunpack.c.l.b16 %v87
    %v447 = vunpack.c.l.b16 %v88
    %v448 = vunpack.c.l.b16 %v89
    %v449 = vunpack.c.l.b16 %v90
    %v450 = vunpack.c.l.b16 %v91
    %v451 = vunpack.c.l.b16 %v92
    %v452 = vunpack.c.l.b16 %v93
    %v453 = vunpack.c.l.b16 %v94
    %v454 = vunpack.c.l.b16 %v95
    %v455 = vunpack.c.l.b16 %v96
    %v456 = vunpack.c.l.b16 %v97
    %v457 = vunpack.c.l.b16 %v98
    %v458 = vunpack.c.l.b16 %v99
    %v459 = vunpack.c.l.b16 %v100
    %v460 = vunpack.c.l.b16 %v101
    %v461 = vunpack.c.l.b16 %v102
    %v462 = vunpack.c.l.b16 %v103
    %v463 = vunpack.c.l.b16 %v104
    %v464 = vunpack.c.l.b16 %v105
    %v465 = vunpack.c.l.b16 %v106
    %v466 = vunpack.c.l.b16 %v107
    %v467 = vunpack.c.l.b16 %v108
    %v468 = vunpack.c.l.b16 %v109
    %v469 = vunpack.c.l.b16 %v110
    %v470 = vunpack.c.l.b16 %v111
    %v471 = vunpack.c.l.b16 %v112
    %v472 = vunpack.c.l.b16 %v113
    %v473 = vunpack.c.l.b16 %v114
    %v474 = vunpack.c.l.b16 %v115
    %v475 = vunpack.c.l.b16 %v116
    %v476 = vunpack.c.l.b16 %v117
    %v477 = vunpack.c.l.b16 %v118
    %v478 = vunpack.c.l.b16 %v119
    %v479 = vunpack.c.l.b16 %v120
    %v480 = vunpack.c.l.b16 %v121
    %v481 = vunpack.c.l.b16 %v122
    %v482 = vunpack.c.l.b16 %v123
    %v483 = vunpack.c.l.b16 %v124
    %v484 = vunpack.c.l.b16 %v125
    %v485 = vunpack.c.l.b16 %v126
    %v486 = vunpack.c.l.b16 %v127
    %v487 = vunpack.c.l.b16 %v128
    %v488 = vunpack.c.l.b16 %v129
    %v489 = vunpack.c.l.b16 %v130
    %v490 = vunpack.c.l.b16 %v131
    %v491 = vunpack.c.l.b16 %v132
    %v492 = vunpack.c.l.b16 %v133
    %v493 = vunpack.c.l.b16 %v134
    %v494 = vunpack.c.l.b16 %v135
    %v495 = vunpack.c.l.b16 %v136
    %v496 = vunpack.c.l.b16 %v137
    %v497 = vunpack.c.l.b16 %v138
    %v498 = vunpack.c.l.b16 %v139
    %v499 = vunpack.c.l.b16 %v140
    %v500 = vunpack.c.l.b16 %v141
    %v501 = vunpack.c.l.b16 %v142
    %v502 = vunpack.c.l.b16 %v143
    %v503 = vunpack.c.l.b16 %v144
    %v504 = vunpack.c.l.b16 %v145
    %v505 = vunpack.c.l.b16 %v146
    %v506 = vunpack.c.l.b16 %v147
    %v507 = vunpack.c.l.b16 %v148
    %v508 = vunpack.c.l.b16 %v149
    %v509 = vunpack.c.l.b16 %v150
    %v510 = vunpack.c.l.b16 %v151
    %v511 = vunpack.c.l.b16 %v152
    %v512 = vunpack.c.l.b16 %v153
    %v513 = vunpack.c.l.b16 %v154
    %v514 = vunpack.c.l.b16 %v155
    %v515 = vunpack.c.l.b16 %v156
    %v516 = vunpack.c.l.b16 %v157
    %v517 = vunpack.c.l.b16 %v158
    %v518 = vunpack.c.l.b16 %v159
    %v519 = vunpack.c.l.b16 %v160
    %v520 = vunpack.c.l.b16 %v161
    %v521 = vunpack.c.l.b16 %v162
    %v522 = vunpack.c.l.b16 %v163
    %v523 = vunpack.c.l.b16 %v164
    %v524 = vunpack.c.l.b16 %v165
    %v525 = vunpack.c.l.b16 %v166
    %v526 = vunpack.c.l.b16 %v167
    %v527 = vunpack.c.l.b16 %v168
    %v528 = vunpack.c.l.b16 %v169
    %v529 = vunpack.c.l.b16 %v170
    %v530 = vunpack.c.l.b16 %v171
    %v531 = vunpack.c.l.b16 %v172
    %v532 = vunpack.c.l.b16 %v173
    %v533 = vunpack.c.l.b16 %v174
    %v534 = vunpack.c.l.b16 %v175
    %v535 = vunpack.c.l.b16 %v176
    %v536 = vunpack.c.l.b16 %v177
    %v537 = vunpack.c.l.b16 %v178
    %v538 = vunpack.c.l.b16 %v179
    %v539 = vunpack.c.l.b16 %v180
    %v540 = vunpack.c.l.b16 %v181
    %v541 = vunpack.c.l.b16 %v182
    %v542 = vunpack.c.l.b16 %v183
    %v543 = vunpack.c.l.b16 %v184
    %v544 = vunpack.c.l.b16 %v185
    %v545 = vunpack.c.l.b16 %v186
    %v546 = vunpack.c.l.b16 %v187
    %v547 = vunpack.c.l.b16 %v188
    %v548 = vunpack.c.l.b16 %v189
    %v549 = vpack.c.b16 %v390, %v389
    %v550 = vpack.c.b16 %v392, %v391
    %v551 = vpack.c.b16 %v394, %v393
    %v552 = vpack.c.b16 %v396, %v395
    %v553 = vpack.c.b16 %v398, %v397
    %v554 = vpack.c.b16 %v400, %v399
    %v555 = vpack.c.b16 %v402, %v401
    %v556 = vpack.c.b16 %v404, %v403
    %v557 = vpack.c.b16 %v406, %v405
    %v558 = vpack.c.b16 %v408, %v407
    %v559 = vpack.c.b16 %v410, %v409
    %v560 = vpack.c.b16 %v412, %v411
    %v561 = vpack.c.b16 %v414, %v413
    %v562 = vpack.c.b16 %v416, %v415
    %v563 = vpack.c.b16 %v418, %v417
    %v564 = vpack.c.b16 %v420, %v419
    %v565 = vpack.c.b16 %v422, %v421
    %v566 = vpack.c.b16 %v424, %v423
    %v567 = vpack.c.b16 %v426, %v425
    %v568 = vpack.c.b16 %v428, %v427
    %v569 = vpack.c.b16 %v430, %v429
    %v570 = vpack.c.b16 %v432, %v431
    %v571 = vpack.c.b16 %v434, %v433
    %v572 = vpack.c.b16 %v436, %v435
    %v573 = vpack.c.b16 %v438, %v437
    %v574 = vpack.c.b16 %v440, %v439
    %v575 = vpack.c.b16 %v442, %v441
    %v576 = vpack.c.b16 %v444, %v443
    %v577 = vpack.c.b16 %v446, %v445
    %v578 = vpack.c.b16 %v448, %v447
    %v579 = vpack.c.b16 %v450, %v449
    %v580 = vpack.c.b16 %v452, %v451
    %v581 = vpack.c.b16 %v454, %v453
    %v582 = vpack.c.b16 %v456, %v455
    %v583 = vpack.c.b16 %v458, %v457
    %v584 = vpack.c.b16 %v460, %v459
    %v585 = vpack.c.b16 %v462, %v461
    %v586 = vpack.c.b16 %v464, %v463
    %v587 = vpack.c.b16 %v466, %v465
    %v588 = vpack.c.b16 %v468, %v467
    %v589 = vpack.c.b16 %v470, %v469
    %v590 = vpack.c.b16 %v472, %v471
    %v591 = vpack.c.b16 %v474, %v473
    %v592 = vpack.c.b16 %v476, %v475
    %v593 = vpack.c.b16 %v478, %v477
    %v594 = vpack.c.b16 %v480, %v479
    %v595 = vpack.c.b16 %v482, %v481
    %v596 = vpack.c.b16 %v484, %v483
    %v597 = vpack.c.b16 %v486, %v485
    %v598 = vpack.c.b16 %v488, %v487
    %v599 = vpack.c.b16 %v490, %v489
    %v600 = vpack.c.b16 %v492, %v491
    %v601 = vpack.c.b16 %v494, %v493
    %v602 = vpack.c.b16 %v496, %v495
    %v603 = vpack.c.b16 %v498, %v497
    %v604 = vpack.c.b16 %v500, %v499
    %v605 = vpack.c.b16 %v502, %v501
    %v606 = vpack.c.b16 %v504, %v503
    %v607 = vpack.c.b16 %v506, %v505
    %v608 = vpack.c.b16 %v508, %v507
    %v609 = vpack.c.b16 %v510, %v509
    %v610 = vpack.c.b16 %v512, %v511
    %v611 = vpack.c.b16 %v514, %v513
    %v612 = vpack.c.b16 %v516, %v515
    %v613 = vpack.c.b16 %v518, %v517
    %v614 = vpack.c.b16 %v520, %v519
    %v615 = vpack.c.b16 %v522, %v521
    %v616 = vpack.c.b16 %v524, %v523
    %v617 = vpack.c.b16 %v526, %v525
    %v618 = vpack.c.b16 %v528, %v527
    %v619 = vpack.c.b16 %v530, %v529
    %v620 = vpack.c.b16 %v532, %v531
    %v621 = vpack.c.b16 %v534, %v533
    %v622 = vpack.c.b16 %v536, %v535
    %v623 = vpack.c.b16 %v538, %v537
    %v624 = vpack.c.b16 %v540, %v539
    %v625 = vpack.c.b16 %v542, %v541
    %v626 = vpack.c.b16 %v544, %v543
    %v627 = vpack.c.b16 %v546, %v545
    %v628 = vpack.c.b16 %v548, %v547
    %709 = vmatprep.subr.bf16.mxu0 0
    %710 = vmatpush1.bf16.msra.mxu0 %v549
    %711 = vmatprep.subr.bf16.mxu0 0
    %712 = vmatpush1.bf16.msra.mxu0 %v550
    %713 = vmatprep.subr.bf16.mxu0 0
    %714 = vmatpush1.bf16.msra.mxu0 %v551
    %715 = vmatprep.subr.bf16.mxu0 0
    %716 = vmatpush1.bf16.msra.mxu0 %v552
    %717 = vmatprep.subr.bf16.mxu0 0
    %718 = vmatpush1.bf16.msra.mxu0 %v553
    %719 = vmatprep.subr.bf16.mxu0 0
    %720 = vmatpush1.bf16.msra.mxu0 %v554
    %721 = vmatprep.subr.bf16.mxu0 0
    %722 = vmatpush1.bf16.msra.mxu0 %v555
    %723 = vmatprep.subr.bf16.mxu0 0
    %724 = vmatpush1.bf16.msra.mxu0 %v556
    %725 = vmatprep.subr.bf16.mxu0 0
    %726 = vmatpush1.bf16.msra.mxu0 %v557
    %727 = vmatprep.subr.bf16.mxu0 0
    %728 = vmatpush1.bf16.msra.mxu0 %v558
    %729 = vmatprep.subr.bf16.mxu0 0
    %730 = vmatpush1.bf16.msra.mxu0 %v559
    %731 = vmatprep.subr.bf16.mxu0 0
    %732 = vmatpush1.bf16.msra.mxu0 %v560
    %733 = vmatprep.subr.bf16.mxu0 0
    %734 = vmatpush1.bf16.msra.mxu0 %v561
    %735 = vmatprep.subr.bf16.mxu0 0
    %736 = vmatpush1.bf16.msra.mxu0 %v562
    %737 = vmatprep.subr.bf16.mxu0 0
    %738 = vmatpush1.bf16.msra.mxu0 %v563
    %739 = vmatprep.subr.bf16.mxu0 0
    %740 = vmatpush1.bf16.msra.mxu0 %v564
    %741 = vmatprep.mubr.bf16.mxu0 %v210
    %742 = vmatmul.mubr.bf16.gmra.mrb[0].mxu0 %v209
    %v743 = vpop.f32.mrb[0].mxu0
    %v744 = vadd.f32 %v193, %v743
    %v745 = vpop.f32.mrb[0].mxu0
    %v746 = vpop.f32.mrb[0].mxu0
    %v747 = vpop.f32.mrb[0].mxu0
    %748 = vdwg.mxu0
    %749 = vmatprep.subr.bf16.mxu0 0
    %750 = vmatpush1.bf16.msra.mxu0 %v565
    %751 = vmatprep.subr.bf16.mxu0 0
    %752 = vmatpush1.bf16.msra.mxu0 %v566
    %753 = vmatprep.subr.bf16.mxu0 0
    %754 = vmatpush1.bf16.msra.mxu0 %v567
    %755 = vmatprep.subr.bf16.mxu0 0
    %756 = vmatpush1.bf16.msra.mxu0 %v568
    %757 = vmatprep.subr.bf16.mxu0 0
    %758 = vmatpush1.bf16.msra.mxu0 %v569
    %759 = vmatprep.subr.bf16.mxu0 0
    %760 = vmatpush1.bf16.msra.mxu0 %v570
    %761 = vmatprep.subr.bf16.mxu0 0
    %762 = vmatpush1.bf16.msra.mxu0 %v571
    %763 = vmatprep.subr.bf16.mxu0 0
    %764 = vmatpush1.bf16.msra.mxu0 %v572
    %765 = vmatprep.subr.bf16.mxu0 0
    %766 = vmatpush1.bf16.msra.mxu0 %v573
    %767 = vmatprep.subr.bf16.mxu0 0
    %768 = vmatpush1.bf16.msra.mxu0 %v574
    %769 = vmatprep.subr.bf16.mxu0 0
    %770 = vmatpush1.bf16.msra.mxu0 %v575
    %771 = vmatprep.subr.bf16.mxu0 0
    %772 = vmatpush1.bf16.msra.mxu0 %v576
    %773 = vmatprep.subr.bf16.mxu0 0
    %774 = vmatpush1.bf16.msra.mxu0 %v577
    %775 = vmatprep.subr.bf16.mxu0 0
    %776 = vmatpush1.bf16.msra.mxu0 %v578
    %777 = vmatprep.subr.bf16.mxu0 0
    %778 = vmatpush1.bf16.msra.mxu0 %v579
    %779 = vmatprep.subr.bf16.mxu0 0
    %780 = vmatpush1.bf16.msra.mxu0 %v580
    %781 = vmatprep.mubr.bf16.mxu0 %v212
    %782 = vmatmul.mubr.bf16.gmra.mrb[0].mxu0 %v211
    %v783 = vpop.f32.mrb[0].mxu0
    %v784 = vadd.f32 %v744, %v783
    %v785 = vpop.f32.mrb[0].mxu0
    %v786 = vpop.f32.mrb[0].mxu0
    %v787 = vpop.f32.mrb[0].mxu0
    %788 = vdwg.mxu0
    %789 = vmatprep.subr.bf16.mxu0 0
    %790 = vmatpush1.bf16.msra.mxu0 %v581
    %791 = vmatprep.subr.bf16.mxu0 0
    %792 = vmatpush1.bf16.msra.mxu0 %v582
    %793 = vmatprep.subr.bf16.mxu0 0
    %794 = vmatpush1.bf16.msra.mxu0 %v583
    %795 = vmatprep.subr.bf16.mxu0 0
    %796 = vmatpush1.bf16.msra.mxu0 %v584
    %797 = vmatprep.subr.bf16.mxu0 0
    %798 = vmatpush1.bf16.msra.mxu0 %v585
    %799 = vmatprep.subr.bf16.mxu0 0
    %800 = vmatpush1.bf16.msra.mxu0 %v586
    %801 = vmatprep.subr.bf16.mxu0 0
    %802 = vmatpush1.bf16.msra.mxu0 %v587
    %803 = vmatprep.subr.bf16.mxu0 0
    %804 = vmatpush1.bf16.msra.mxu0 %v588
    %805 = vmatprep.subr.bf16.mxu0 0
    %806 = vmatpush1.bf16.msra.mxu0 %v589
    %807 = vmatprep.subr.bf16.mxu0 0
    %808 = vmatpush1.bf16.msra.mxu0 %v590
    %809 = vmatprep.subr.bf16.mxu0 0
    %810 = vmatpush1.bf16.msra.mxu0 %v591
    %811 = vmatprep.subr.bf16.mxu0 0
    %812 = vmatpush1.bf16.msra.mxu0 %v592
    %813 = vmatprep.subr.bf16.mxu0 0
    %814 = vmatpush1.bf16.msra.mxu0 %v593
    %815 = vmatprep.subr.bf16.mxu0 0
    %816 = vmatpush1.bf16.msra.mxu0 %v594
    %817 = vmatprep.subr.bf16.mxu0 0
    %818 = vmatpush1.bf16.msra.mxu0 %v595
    %819 = vmatprep.subr.bf16.mxu0 0
    %820 = vmatpush1.bf16.msra.mxu0 %v596
    %821 = vmatprep.mubr.bf16.mxu0 %v214
    %822 = vmatmul.mubr.bf16.gmra.mrb[0].mxu0 %v213
    %v823 = vpop.f32.mrb[0].mxu0
    %v824 = vadd.f32 %v784, %v823
    %v825 = vpop.f32.mrb[0].mxu0
    %v826 = vpop.f32.mrb[0].mxu0
    %v827 = vpop.f32.mrb[0].mxu0
    %828 = vdwg.mxu0
    %829 = vmatprep.subr.bf16.mxu0 0
    %830 = vmatpush1.bf16.msra.mxu0 %v597
    %831 = vmatprep.subr.bf16.mxu0 0
    %832 = vmatpush1.bf16.msra.mxu0 %v598
    %833 = vmatprep.subr.bf16.mxu0 0
    %834 = vmatpush1.bf16.msra.mxu0 %v599
    %835 = vmatprep.subr.bf16.mxu0 0
    %836 = vmatpush1.bf16.msra.mxu0 %v600
    %837 = vmatprep.subr.bf16.mxu0 0
    %838 = vmatpush1.bf16.msra.mxu0 %v601
    %839 = vmatprep.subr.bf16.mxu0 0
    %840 = vmatpush1.bf16.msra.mxu0 %v602
    %841 = vmatprep.subr.bf16.mxu0 0
    %842 = vmatpush1.bf16.msra.mxu0 %v603
    %843 = vmatprep.subr.bf16.mxu0 0
    %844 = vmatpush1.bf16.msra.mxu0 %v604
    %845 = vmatprep.subr.bf16.mxu0 0
    %846 = vmatpush1.bf16.msra.mxu0 %v605
    %847 = vmatprep.subr.bf16.mxu0 0
    %848 = vmatpush1.bf16.msra.mxu0 %v606
    %849 = vmatprep.subr.bf16.mxu0 0
    %850 = vmatpush1.bf16.msra.mxu0 %v607
    %851 = vmatprep.subr.bf16.mxu0 0
    %852 = vmatpush1.bf16.msra.mxu0 %v608
    %853 = vmatprep.subr.bf16.mxu0 0
    %854 = vmatpush1.bf16.msra.mxu0 %v609
    %855 = vmatprep.subr.bf16.mxu0 0
    %856 = vmatpush1.bf16.msra.mxu0 %v610
    %857 = vmatprep.subr.bf16.mxu0 0
    %858 = vmatpush1.bf16.msra.mxu0 %v611
    %859 = vmatprep.subr.bf16.mxu0 0
    %860 = vmatpush1.bf16.msra.mxu0 %v612
    %861 = vmatprep.mubr.bf16.mxu0 %v216
    %862 = vmatmul.mubr.bf16.gmra.mrb[0].mxu0 %v215
    %v863 = vpop.f32.mrb[0].mxu0
    %v864 = vadd.f32 %v824, %v863
    %v865 = vpop.f32.mrb[0].mxu0
    %v866 = vpop.f32.mrb[0].mxu0
    %v867 = vpop.f32.mrb[0].mxu0
    %868 = vdwg.mxu0
    %869 = vmatprep.subr.bf16.mxu0 0
    %870 = vmatpush1.bf16.msra.mxu0 %v613
    %871 = vmatprep.subr.bf16.mxu0 0
    %872 = vmatpush1.bf16.msra.mxu0 %v614
    %873 = vmatprep.subr.bf16.mxu0 0
    %874 = vmatpush1.bf16.msra.mxu0 %v615
    %875 = vmatprep.subr.bf16.mxu0 0
    %876 = vmatpush1.bf16.msra.mxu0 %v616
    %877 = vmatprep.subr.bf16.mxu0 0
    %878 = vmatpush1.bf16.msra.mxu0 %v617
    %879 = vmatprep.subr.bf16.mxu0 0
    %880 = vmatpush1.bf16.msra.mxu0 %v618
    %881 = vmatprep.subr.bf16.mxu0 0
    %882 = vmatpush1.bf16.msra.mxu0 %v619
    %883 = vmatprep.subr.bf16.mxu0 0
    %884 = vmatpush1.bf16.msra.mxu0 %v620
    %885 = vmatprep.subr.bf16.mxu0 0
    %886 = vmatpush1.bf16.msra.mxu0 %v621
    %887 = vmatprep.subr.bf16.mxu0 0
    %888 = vmatpush1.bf16.msra.mxu0 %v622
    %889 = vmatprep.subr.bf16.mxu0 0
    %890 = vmatpush1.bf16.msra.mxu0 %v623
    %891 = vmatprep.subr.bf16.mxu0 0
    %892 = vmatpush1.bf16.msra.mxu0 %v624
    %893 = vmatprep.subr.bf16.mxu0 0
    %894 = vmatpush1.bf16.msra.mxu0 %v625
    %895 = vmatprep.subr.bf16.mxu0 0
    %896 = vmatpush1.bf16.msra.mxu0 %v626
    %897 = vmatprep.subr.bf16.mxu0 0
    %898 = vmatpush1.bf16.msra.mxu0 %v627
    %899 = vmatprep.subr.bf16.mxu0 0
    %900 = vmatpush1.bf16.msra.mxu0 %v628
    %901 = vmatprep.mubr.bf16.mxu0 %v218
    %902 = vmatmul.mubr.bf16.gmra.mrb[0].mxu0 %v217
    %v903 = vpop.f32.mrb[0].mxu0
    %v904 = vadd.f32 %v864, %v903
    %v905 = vpop.f32.mrb[0].mxu0
    %v906 = vpop.f32.mrb[0].mxu0
    %v907 = vpop.f32.mrb[0].mxu0
    %908 = vdwg.mxu0
    %v909 = vmax.f32 %v904, 0.0
    %v910 = vpack.c.bf16 %v909, %v909
    %v911 = vld [vmem:[%s2] sm:$0xf]
    %v912 = vld [vmem:[%s2 + $0x4] sm:$0xf]
    %v913 = vld [vmem:[%s2 + $0x8] sm:$0xf]
    %v914 = vld [vmem:[%s2 + $0xc] sm:$0xf]
    %v915 = vld [vmem:[%s2 + $0x10] sm:$0xf]
    %v916 = vld [vmem:[%s2 + $0x14] sm:$0xf]
    %v917 = vld [vmem:[%s2 + $0x18] sm:$0xf]
    %v918 = vld [vmem:[%s2 + $0x1c] sm:$0xf]
    %v919 = vlaneseq
    %v920 = vshrl.u32 %v919, 7
    %v921 = vsub.s32 1, %v920
    %v922 = vrot.slane %v24, %v921
    %v931 = vunpack.c.l.b16 %v911
    %v932 = vunpack.c.l.b16 %v912
    %v933 = vunpack.c.l.b16 %v913
    %v934 = vunpack.c.l.b16 %v914
    %v935 = vunpack.c.l.b16 %v915
    %v936 = vunpack.c.l.b16 %v916
    %v937 = vunpack.c.l.b16 %v917
    %v938 = vunpack.c.l.b16 %v918
    %v939 = vpack.c.b16 %v932, %v931
    %v940 = vpack.c.b16 %v934, %v933
    %v941 = vpack.c.b16 %v936, %v935
    %v942 = vpack.c.b16 %v938, %v937
    %vm947 = vcmask 523264
    %v949 = vsel %vm947, %v910, 0
    %951 = vmatprep.subr.bf16.mxu0 0
    %952 = vmatpush1.bf16.msra.mxu0 %v939
    %953 = vmatprep.subr.bf16.mxu0 0
    %954 = vmatpush1.bf16.msra.mxu0 %v940
    %955 = vmatprep.subr.bf16.mxu0 0
    %956 = vmatpush1.bf16.msra.mxu0 %v941
    %957 = vmatprep.subr.bf16.mxu0 0
    %958 = vmatpush1.bf16.msra.mxu0 %v942
    %959 = vmatprep.subr.bf16.mxu0 0
    %960 = vmatpush1.bf16.msra.mxu0 0
    %961 = vmatprep.subr.bf16.mxu0 0
    %962 = vmatpush1.bf16.msra.mxu0 0
    %963 = vmatprep.subr.bf16.mxu0 0
    %964 = vmatpush1.bf16.msra.mxu0 0
    %965 = vmatprep.subr.bf16.mxu0 0
    %966 = vmatpush1.bf16.msra.mxu0 0
    %967 = vmatprep.subr.bf16.mxu0 0
    %968 = vmatpush1.bf16.msra.mxu0 0
    %969 = vmatprep.subr.bf16.mxu0 0
    %970 = vmatpush1.bf16.msra.mxu0 0
    %971 = vmatprep.subr.bf16.mxu0 0
    %972 = vmatpush1.bf16.msra.mxu0 0
    %973 = vmatprep.subr.bf16.mxu0 0
    %974 = vmatpush1.bf16.msra.mxu0 0
    %975 = vmatprep.subr.bf16.mxu0 0
    %976 = vmatpush1.bf16.msra.mxu0 0
    %977 = vmatprep.subr.bf16.mxu0 0
    %978 = vmatpush1.bf16.msra.mxu0 0
    %979 = vmatprep.subr.bf16.mxu0 0
    %980 = vmatpush1.bf16.msra.mxu0 0
    %981 = vmatprep.subr.bf16.mxu0 0
    %982 = vmatpush1.bf16.msra.mxu0 0
    %983 = vmatprep.mubr.bf16.mxu0 0
    %984 = vmatmul.mubr.bf16.gmra.mrb[0].mxu0 %v949
    %v985 = vpop.f32.mrb[0].mxu0
    %v986 = vadd.f32 %v922, %v985
    %v987 = vpop.f32.mrb[0].mxu0
    %v988 = vpop.f32.mrb[0].mxu0
    %v989 = vpop.f32.mrb[0].mxu0
    %990 = vdwg.mxu0
    %991 = vst [vmem:[#allocation2] sm:$0xff] %v986
    %992 = vmax.xlane.f32.xlu0 %v986
    %v993 = vpop.xlane.xlu0 %992
    %v994 = vsub.f32 %v986, %v993
    %v995 = vmul.f32 %v994, 1.442695
    %v996 = vpow.pop %v995
    %997 = vadd.xlane.f32.xlu0 %v996
    %v998 = vpop.xlane.xlu0 %997
    %v999 = vrcp.pop %v998
    %v1000 = vmul.f32 %v996, %v999
    %1001 = vst [vmem:[#allocation4] sm:$0xff] %v1000
    %vm1002 = vcmask 7168
    %1003 = vst.msk [vmem:[%s6] sm:$0xff] %vm1002, %v999
    %v1004 = vlaneseq
    %v1005 = vand.u32 %v1004, 127
    %vm1006 = vcmp.eq.f32.partialorder %v986, %v993
    %v1007 = vsel %vm1006, %v1005, 128
    %v1008 = vand.u32 %v1007, 65535
    %v1009 = vshra.s32 %v1007, 16
    %v1010 = vcvt.s32.f32 %v1008
    %v1011 = vcvt.s32.f32 %v1009
    %1012 = vmin.xlane.f32.xlu0 %v1011
    %v1013 = vpop.xlane.xlu0 %1012
    %vm1014 = vcmp.eq.f32.partialorder %v1011, %v1013
    %v1015 = vsel %vm1014, %v1010, inf
    %1016 = vmin.xlane.f32.xlu0 %v1015
    %v1017 = vpop.xlane.xlu0 %1016
    %v1018 = vcvt.f32.s32 %v1017
    %v1019 = vcvt.f32.s32 %v1013
    %v1020 = vshll.u32 %v1019, 16
    %v1021 = vadd.s32 %v1020, %v1018
    %1022 = vst.msk [vmem:[%s7] sm:$0xff] %vm1002, %v1021
    // Predicated region
    $region18: #{tpu_custom_call.1} parent=1 // pred_check
      _
    $region19: #{tpu_custom_call.1} parent=1 // pred_check_branch
      %1024 = sbr.rel (0) target = $region21
    $region20: #{tpu_custom_call.1} parent=1 // pred_region
      %s1026 = ssub.s32 128, 128
      %1027 = vsyncadd [#allocation3], %s1026
      %s1029 = sshll.u32 [#allocation2], 4
      %s1030 = int_to_ptr.vmem [resolvable:$true] %s1029
      %1032 = dma.vmem_to_hbm [thread:$0]  %s1030, 128, %s4, [#allocation3]
    $region21: #{tpu_custom_call.1} parent=1 // pred_fallthru
      _
    // Predicated region
    $region22: #{tpu_custom_call.1} parent=1 // pred_check
      _
    $region23: #{tpu_custom_call.1} parent=1 // pred_check_branch
      %1034 = sbr.rel (0) target = $region25
    $region24: #{tpu_custom_call.1} parent=1 // pred_region
      %s1036 = ssub.s32 128, 128
      %1037 = vsyncadd [#allocation5], %s1036
      %s1039 = sshll.u32 [#allocation4], 4
      %s1040 = int_to_ptr.vmem [resolvable:$true] %s1039
      %1042 = dma.vmem_to_hbm [thread:$0]  %s1040, 128, %s5, [#allocation5]
    $region25: #{tpu_custom_call.1} parent=1 // pred_fallthru
      _
    // Predicated region
    $region26: #{tpu_custom_call.1} parent=1 // pred_check
      _
    $region27: #{tpu_custom_call.1} parent=1 // pred_check_branch
      %1044 = sbr.rel (0) target = $region29
    $region28: #{tpu_custom_call.1} parent=1 // pred_region
      _
    $region29: #{tpu_custom_call.1} parent=1 // pred_fallthru
      _
    // Predicated region
    $region30: #{tpu_custom_call.1} parent=1 // pred_check
      _
    $region31: #{tpu_custom_call.1} parent=1 // pred_check_branch
      %1046 = sbr.rel (0) target = $region33
    $region32: #{tpu_custom_call.1} parent=1 // pred_region
      _
    $region33: #{tpu_custom_call.1} parent=1 // pred_fallthru
      _
    // Predicated region
    $region34: #{tpu_custom_call.1} parent=1 // pred_check
      _
    $region35: #{tpu_custom_call.1} parent=1 // pred_check_branch
      %1048 = sbr.rel (0) target = $region37
    $region36: #{tpu_custom_call.1} parent=1 // pred_region
      %1049 = dma.done [#allocation3], 128
    $region37: #{tpu_custom_call.1} parent=1 // pred_fallthru
      _
    // Predicated region
    $region38: #{tpu_custom_call.1} parent=1 // pred_check
      _
    $region39: #{tpu_custom_call.1} parent=1 // pred_check_branch
      %1051 = sbr.rel (0) target = $region41
    $region40: #{tpu_custom_call.1} parent=1 // pred_region
      %1052 = dma.done [#allocation5], 128
    $region41: #{tpu_custom_call.1} parent=1 // pred_fallthru
      _
    // Predicated region
    $region42: #{tpu_custom_call.1} parent=1 // pred_check
      _
    $region43: #{tpu_custom_call.1} parent=1 // pred_check_branch
      %1054 = sbr.rel (0) target = $region45
    $region44: #{tpu_custom_call.1} parent=1 // pred_region
      _
    $region45: #{tpu_custom_call.1} parent=1 // pred_fallthru
      _
    // Predicated region
    $region46: #{tpu_custom_call.1} parent=1 // pred_check
      _
    $region47: #{tpu_custom_call.1} parent=1 // pred_check_branch
      %1056 = sbr.rel (0) target = $region49
    $region48: #{tpu_custom_call.1} parent=1 // pred_region
      _
    $region49: #{tpu_custom_call.1} parent=1 // pred_fallthru
      _
    %1057 = vsyncpa [#allocation3], 1
    %1058 = vsyncpa [#allocation5], 1

</llo_original>
